<compile_context>
chip_gen: v6e
topology: v6e:2x2x1
jax: 0.10.0
libtpu: 0.0.40
codegen_flags: <defaults>
</compile_context>

<pallas_src>
import functools
import numpy as np
import jax
import jax.numpy as jnp
from jax import lax
from jax.experimental import pallas as pl
from jax.experimental.pallas import tpu as pltpu

IN_CH = 6      # wp(2) + ctrl(4) channels fed to SpatialGRU
HID = 32       # SpatialGRU hidden size == BEV channel count
FFN_MID = 64   # ffn mid channels

# Re-derived VMEM budget: per-grid-step working set at these shapes is < 4 MiB;
# 32 MiB keeps headroom on every generation incl. v7x (64 MiB physical).
_VMEM_LIMIT = 32 * 1024 * 1024

# pltpu.roll follows jnp.roll semantics (out[i] = x[i - shift]); resolved
# statically here, optionally re-probed at runtime via detect_roll_convention().
_DEFAULT_NUMPY_ROLL = True


def detect_roll_convention():
    """One-shot device probe of pltpu.roll's sign convention (call outside jit)."""
    def kernel(x_ref, o_ref):
        o_ref[...] = pltpu.roll(x_ref[...], 1, axis=1)
    x = jnp.tile(jnp.arange(128, dtype=jnp.float32)[None, :], (8, 1))
    y = pl.pallas_call(
        kernel, out_shape=jax.ShapeDtypeStruct((8, 128), jnp.float32))(x)
    return bool(jax.device_get(y)[0, 0] == 127.0)


# ------------------------------ host-side helpers ------------------------------

def _pad_len(hw):
    return ((hw + 127) // 128) * 128


def _make_tap_masks(H, W, L):
    """(9, L) f32 0/1 masks: tap (dy,dx) valid at flat output position p."""
    hw = H * W
    p = np.arange(L)
    y = p // W
    x = p % W
    in_img = p < hw
    masks = np.zeros((9, L), np.float32)
    for ky in range(3):
        for kx in range(3):
            dy, dx = ky - 1, kx - 1
            valid = in_img & (y + dy >= 0) & (y + dy < H) & (x + dx >= 0) & (x + dx < W)
            masks[ky * 3 + kx] = valid.astype(np.float32)
    return jnp.asarray(masks)


def _taps_mat(w_hwio):
    """(3,3,cin,cout) HWIO conv weight -> (cout, 9*cin), columns (tap, cin)."""
    _, _, cin, cout = w_hwio.shape
    return jnp.transpose(w_hwio.reshape(9, cin, cout), (2, 0, 1)).reshape(cout, 9 * cin)


# ------------------------------ in-kernel helpers ------------------------------

def _sigmoid(x):
    # exp on the EUP; approx reciprocal rides the EUP too (idle slot) instead of
    # VALU refinement steps.  Verified within 1e-2 end-to-end over T=8 steps.
    return pl.reciprocal(1.0 + jnp.exp(-x), approx=True)


def _conv3x3_operand(v, mask_rows, ww, numpy_roll):
    """(rows, L) -> (9*rows, L) shifted-input operand of a zero-padded 3x3 conv.

    Tap (dy, dx) is a lane rotation by dy*W+dx (XLU) times a precomputed 0/1
    boundary mask (out-of-image / pad / cross-wrap lanes zeroed), so one
    (cout, 9*rows) @ (9*rows, L) MXU matmul realises the whole conv.
    """
    L = v.shape[-1]
    pieces = []
    for ky in range(3):
        for kx in range(3):
            off = (ky - 1) * ww + (kx - 1)
            if off == 0:                      # centre tap: no shift, mask == 1
                pieces.append(v)
            else:
                shift = ((-off) % L) if numpy_roll else (off % L)
                pieces.append(pltpu.roll(v, shift, axis=1) * mask_rows[ky * 3 + kx])
    return jnp.concatenate(pieces, axis=0)


# ----------------------------- SpatialGRU kernel -------------------------------

def _spatial_gru_kernel(ww, numpy_roll,
                        gx_ref, h0_ref, masks_ref, wurs_ref, wtils_ref,
                        out_ref):
    T = gx_ref.shape[0]
    L = h0_ref.shape[-1]

    # Loop-invariant loads / broadcasts hoisted out of the T loop
    # (JAX does not CSE broadcast_in_dim).
    masks = masks_ref[...]                                   # (9, L)
    wurs = wurs_ref[...]                                     # (64, 288)
    wtils = wtils_ref[...]                                   # (32, 288)
    mrows = [jnp.broadcast_to(masks[k:k + 1, :], (HID, L)) for k in range(9)]

    def step(t, s):
        # x-path (wp/ctrl, spatially constant) + conv bias, per-tap coefficients
        # contracted against the boundary masks: one (96, 9) @ (9, L) matmul.
        xc = jnp.dot(gx_ref[t], masks, preferred_element_type=jnp.float32)

        # Fused upd+rst conv: single K=288 MXU contraction.
        m_s = _conv3x3_operand(s, mrows, ww, numpy_roll)                 # (288, L)
        g_ur = jnp.dot(wurs, m_s, preferred_element_type=jnp.float32) + xc[:2 * HID]
        upd = _sigmoid(g_ur[:HID])
        rst = _sigmoid(g_ur[HID:])

        m_r = _conv3x3_operand((1.0 - rst) * s, mrows, ww, numpy_roll)   # (288, L)
        g_t = jnp.dot(wtils, m_r, preferred_element_type=jnp.float32) + xc[2 * HID:]
        s_new = (1.0 - upd) * s + upd * jnp.maximum(g_t, 0.0)

        out_ref[t] = s_new
        return s_new

    lax.fori_loop(0, T, step, h0_ref[...], unroll=True)


def _prep_gru_inputs(params, x_btc):
    """Shifted-input weight matrices + per-(b,t) per-tap x-path coefficients."""
    w_ur_s = jnp.concatenate([params['w_upd_s'], params['w_rst_s']], axis=3)
    w_ur_x = jnp.concatenate([params['w_upd_x'], params['w_rst_x']], axis=3)
    wurs_mat = _taps_mat(w_ur_s).astype(jnp.float32)                   # (64, 288)
    wtils_mat = _taps_mat(params['w_til_s']).astype(jnp.float32)       # (32, 288)

    def gx_of(w_x):
        w9 = w_x.reshape(9, IN_CH, w_x.shape[-1])                      # (9, 6, cout)
        return jnp.einsum('btc,kcm->btmk', x_btc, w9)                  # (B, T, cout, 9)

    gx_ur = gx_of(w_ur_x)                                              # (B, T, 64, 9)
    b_ur = jnp.concatenate([params['b_upd'].reshape(-1),
                            params['b_rst'].reshape(-1)])              # (64,)
    # Conv bias folded into the always-valid centre tap (mask[4] == 1 in-image).
    gx_ur = gx_ur.at[..., 4].add(b_ur)
    gx_til = gx_of(params['w_til_x'])                                  # (B, T, 32, 9)
    gx = jnp.concatenate([gx_ur, gx_til], axis=2).astype(jnp.float32)  # (B, T, 96, 9)
    return wurs_mat, wtils_mat, gx


def spatial_gru_pallas(x_btc, state_nchw, params, numpy_roll=None):
    if numpy_roll is None:
        numpy_roll = _DEFAULT_NUMPY_ROLL
    B, T, cin = x_btc.shape
    _, C, H, W = state_nchw.shape
    assert C == HID and cin == IN_CH
    hw = H * W
    L = _pad_len(hw)

    x = x_btc.astype(jnp.float32)
    h0 = state_nchw.astype(jnp.float32).reshape(B, C, hw)
    if L != hw:
        h0 = jnp.pad(h0, ((0, 0), (0, 0), (0, L - hw)))

    masks = _make_tap_masks(H, W, L)                                   # (9, L)
    wurs_mat, wtils_mat, gx = _prep_gru_inputs(params, x)

    kernel = functools.partial(_spatial_gru_kernel, W, numpy_roll)

    def fixed(a):
        return pl.BlockSpec(a.shape, lambda b: (0,) * a.ndim)

    out = pl.pallas_call(
        kernel,
        out_shape=jax.ShapeDtypeStruct((B, T, C, L), jnp.float32),
        grid=(B,),
        in_specs=[pl.BlockSpec((None, T, 3 * HID, 9), lambda b: (b, 0, 0, 0)),
                  pl.BlockSpec((None, C, L), lambda b: (b, 0, 0)),
                  fixed(masks), fixed(wurs_mat), fixed(wtils_mat)],
        out_specs=pl.BlockSpec((None, T, C, L), lambda b: (b, 0, 0, 0)),
        compiler_params=pltpu.CompilerParams(
            dimension_semantics=("parallel",),
            vmem_limit_bytes=_VMEM_LIMIT),
    )(gx, h0, masks, wurs_mat, wtils_mat)

    out = out[..., :hw]                                                # drop lane pad
    # (B, T, C, hw) -> (B*T, C, H, W)  (matches torch's .view, b-major / t-minor)
    return out.reshape(B * T, C, H, W)


# -------------------------------- FFN kernel -----------------------------------
# Dead code in the reference forward (its result is discarded); kept for
# completeness, flag-gated off by default, verified separately in __main__.

def _ffn_kernel(ww, numpy_roll,
                y_ref, prev_ref, masks_ref,
                w1_ref, b1_ref, w2_ref, b2_ref, w3_ref, b3_ref,
                out_ref):
    L = y_ref.shape[-1]
    masks = masks_ref[...]
    mrows = [jnp.broadcast_to(masks[k:k + 1, :], (FFN_MID, L)) for k in range(9)]

    y = y_ref[...]                                                     # (32, L)
    a = jnp.maximum(jnp.dot(w1_ref[...], y, preferred_element_type=jnp.float32)
                    + b1_ref[...], 0.0)                                # (64, L)
    m = _conv3x3_operand(a, mrows, ww, numpy_roll)                     # (576, L)
    a = jnp.maximum(jnp.dot(w2_ref[...], m, preferred_element_type=jnp.float32)
                    + b2_ref[...], 0.0)                                # (32, L)
    out_ref[...] = (jnp.dot(w3_ref[...], a, preferred_element_type=jnp.float32)
                    + b3_ref[...] + prev_ref[...])


def ffn_pallas(y_nchw, prev_nchw, params, numpy_roll=None):
    if numpy_roll is None:
        numpy_roll = _DEFAULT_NUMPY_ROLL
    BT, C, H, W = y_nchw.shape
    assert C == HID
    hw = H * W
    L = _pad_len(hw)

    def flat(a):   # no NCHW transposes: channels already on sublanes per image
        a = a.astype(jnp.float32).reshape(BT, C, hw)
        if L != hw:
            a = jnp.pad(a, ((0, 0), (0, 0), (0, L - hw)))
        return a

    y = flat(y_nchw)
    prev = flat(prev_nchw)
    masks = _make_tap_masks(H, W, L)

    w1 = jnp.transpose(params['ffn_w1'], (1, 0)).astype(jnp.float32)   # (64, 32)
    b1 = params['ffn_b1'].reshape(FFN_MID, 1).astype(jnp.float32)
    w2 = _taps_mat(params['ffn_w2']).astype(jnp.float32)               # (32, 576)
    b2 = params['ffn_b2'].reshape(HID, 1).astype(jnp.float32)
    w3 = jnp.transpose(params['ffn_w3'], (1, 0)).astype(jnp.float32)   # (32, 32)
    b3 = params['ffn_b3'].reshape(HID, 1).astype(jnp.float32)

    def fixed(a):
        return pl.BlockSpec(a.shape, lambda i: (0,) * a.ndim)

    out = pl.pallas_call(
        functools.partial(_ffn_kernel, W, numpy_roll),
        out_shape=jax.ShapeDtypeStruct((BT, C, L), jnp.float32),
        grid=(BT,),
        in_specs=[pl.BlockSpec((None, C, L), lambda i: (i, 0, 0)),
                  pl.BlockSpec((None, C, L), lambda i: (i, 0, 0)),
                  fixed(masks),
                  fixed(w1), fixed(b1), fixed(w2), fixed(b2), fixed(w3), fixed(b3)],
        out_specs=pl.BlockSpec((None, C, L), lambda i: (i, 0, 0)),
        compiler_params=pltpu.CompilerParams(
            dimension_semantics=("parallel",),
            vmem_limit_bytes=_VMEM_LIMIT),
    )(y, prev, masks, w1, b1, w2, b2, w3, b3)

    out = out[..., :hw]
    return out.reshape(BT, C, H, W)


# ---------------------------- PredictionModule.forward -------------------------

def prediction_module_forward(params, current_BEV_feature, current_wp,
                              current_ctrl, future_bev_feat_from_last_layer,
                              compute_discarded_ffn=False, numpy_roll=None):
    # @force_fp32(): everything in float32.
    B, C, H, W = current_BEV_feature.shape
    x = jnp.concatenate([current_wp, current_ctrl], axis=2).astype(jnp.float32)  # (B, T, 6)
    future_bev_feat = spatial_gru_pallas(
        x, current_BEV_feature.astype(jnp.float32), params, numpy_roll)          # (B*T, C, H, W)
    if future_bev_feat_from_last_layer is not None and compute_discarded_ffn:
        # Faithful to the reference: computed but never returned (dead work;
        # flag-gated off by default -- XLA would DCE it anyway).
        prev = future_bev_feat_from_last_layer.astype(jnp.float32).reshape(-1, C, H, W)
        _ = ffn_pallas(future_bev_feat, prev, params, numpy_roll)
    return future_bev_feat


# --------------------------------- params --------------------------------------

def init_params(key):
    ks = jax.random.split(key, 14)

    def w(k, shape, fan_in):
        return jax.random.normal(k, shape, jnp.float32) / jnp.sqrt(float(fan_in))

    fin_gru = 9 * (IN_CH + HID)
    return dict(
        w_upd_x=w(ks[0], (3, 3, IN_CH, HID), fin_gru),
        w_upd_s=w(ks[1], (3, 3, HID, HID), fin_gru),
        b_upd=0.1 * jax.random.normal(ks[2], (1, HID), jnp.float32),
        w_rst_x=w(ks[3], (3, 3, IN_CH, HID), fin_gru),
        w_rst_s=w(ks[4], (3, 3, HID, HID), fin_gru),
        b_rst=0.1 * jax.random.normal(ks[5], (1, HID), jnp.float32),
        w_til_x=w(ks[6], (3, 3, IN_CH, HID), fin_gru),
        w_til_s=w(ks[7], (3, 3, HID, HID), fin_gru),          # ConvBlock: bias=False
        ffn_w1=w(ks[8], (HID, FFN_MID), HID),
        ffn_b1=0.1 * jax.random.normal(ks[9], (1, FFN_MID), jnp.float32),
        ffn_w2=w(ks[10], (3, 3, FFN_MID, HID), 9 * FFN_MID),
        ffn_b2=0.1 * jax.random.normal(ks[11], (1, HID), jnp.float32),
        ffn_w3=w(ks[12], (HID, HID), HID),
        ffn_b3=0.1 * jax.random.normal(ks[13], (1, HID), jnp.float32),
    )


# ------------------------------ pure-JAX reference ------------------------------

def _conv2d_ref(x, w_hwio, b, pad):
    out = lax.conv_general_dilated(
        x, w_hwio, window_strides=(1, 1), padding=[(pad, pad), (pad, pad)],
        dimension_numbers=('NCHW', 'HWIO', 'NCHW'),
        precision=lax.Precision.HIGHEST)
    if b is not None:
        out = out + b.reshape(1, -1, 1, 1)
    return out


def prediction_module_ref(params, bev, wp, ctrl):
    B, C, H, W = bev.shape
    x = jnp.concatenate([wp, ctrl], axis=2).astype(jnp.float32)
    T = x.shape[1]
    w_upd = jnp.concatenate([params['w_upd_x'], params['w_upd_s']], axis=2)
    w_rst = jnp.concatenate([params['w_rst_x'], params['w_rst_s']], axis=2)
    w_til = jnp.concatenate([params['w_til_x'], params['w_til_s']], axis=2)
    s = bev.astype(jnp.float32)
    outs = []
    for t in range(T):
        xt = jnp.broadcast_to(x[:, t, :, None, None], (B, IN_CH, H, W))
        xs = jnp.concatenate([xt, s], axis=1)
        u = jax.nn.sigmoid(_conv2d_ref(xs, w_upd, params['b_upd'].reshape(-1), 1))
        r = jax.nn.sigmoid(_conv2d_ref(xs, w_rst, params['b_rst'].reshape(-1), 1))
        xs2 = jnp.concatenate([xt, (1.0 - r) * s], axis=1)
        st = jnp.maximum(_conv2d_ref(xs2, w_til, None, 1), 0.0)
        s = (1.0 - u) * s + u * st
        outs.append(s)
    return jnp.stack(outs, axis=1).reshape(B * T, C, H, W)


def ffn_ref(params, y, prev):
    a = jnp.maximum(_conv2d_ref(y, params['ffn_w1'][None, None],
                                params['ffn_b1'].reshape(-1), 0), 0.0)
    a = jnp.maximum(_conv2d_ref(a, params['ffn_w2'],
                                params['ffn_b2'].reshape(-1), 1), 0.0)
    a = _conv2d_ref(a, params['ffn_w3'][None, None], params['ffn_b3'].reshape(-1), 0)
    return a + prev


# ----------------------------------- main ---------------------------------------

if __name__ == "__main__":
    key = jax.random.PRNGKey(0)
    kp, k1, k2, k3, k4 = jax.random.split(key, 5)
    params = init_params(kp)

    # Probe the roll convention once, outside any trace, and pass it explicitly.
    numpy_roll = detect_roll_convention()

    B, T, H, W = 2, 8, 16, 16
    current_BEV_feature = jax.random.normal(k1, (B, HID, H, W), jnp.float32)
    current_wp = jax.random.normal(k2, (B, T, 2), jnp.float32)
    current_ctrl = jax.random.normal(k3, (B, T, 4), jnp.float32)
    future_from_last = jax.random.normal(k4, (B, T, HID, H, W), jnp.float32)

    out = prediction_module_forward(params, current_BEV_feature, current_wp,
                                    current_ctrl, future_from_last,
                                    numpy_roll=numpy_roll)
    out = jax.block_until_ready(out)
    assert out.shape == (B * T, HID, H, W)

    # Returned value (SpatialGRU path) vs pure-JAX reference.
    ref = prediction_module_ref(params, current_BEV_feature, current_wp, current_ctrl)
    np.testing.assert_allclose(np.asarray(out), np.asarray(ref), rtol=1e-2, atol=1e-2)

    # The ffn branch is discarded by the reference forward; verify the kernel
    # separately here.
    prev = future_from_last.reshape(-1, HID, H, W)
    ffn_out = jax.block_until_ready(ffn_pallas(out, prev, params, numpy_roll))
    ffn_r = ffn_ref(params, out, prev)
    np.testing.assert_allclose(np.asarray(ffn_out), np.asarray(ffn_r), rtol=1e-2, atol=1e-2)

    print("KERNEL_OK")
</pallas_src>

<mosaic_0001>
module attributes {stable_mosaic.version = 11 : i64} {
  func.func @kernel(%arg0: memref<8x128xf32, #tpu.memory_space<vmem>>, %arg1: memref<8x128xf32, #tpu.memory_space<vmem>>) attributes {dimension_semantics = [], scalar_prefetch = 0 : i64, scratch_operands = 0 : i64, tpu.core_type = #tpu.core_type<tc>} {
    %c0 = arith.constant 0 : index
    %c0_0 = arith.constant 0 : index
    %0 = vector.load %arg0[%c0, %c0_0] : memref<8x128xf32, #tpu.memory_space<vmem>>, vector<8x128xf32>
    %c1_i32 = arith.constant 1 : i32
    %1 = tpu.dynamic_rotate %0 by %c1_i32 dim 1 : vector<8x128xf32>, i32 -> vector<8x128xf32>
    %c0_1 = arith.constant 0 : index
    %c0_2 = arith.constant 0 : index
    %2 = vector.load %arg1[%c0_1, %c0_2] : memref<8x128xf32, #tpu.memory_space<vmem>>, vector<8x128xf32>
    tpu.vector_store %arg1[%c0_1, %c0_2], %1 {strides = array<i32>} : memref<8x128xf32, #tpu.memory_space<vmem>>, vector<8x128xf32>,
    return
  }
}

</mosaic_0001>

<llo_original>
// kernel: tpu_custom_call.1
$region0: #{tpu_custom_call.1}
  #allocation0 [shape = 'u32[]', space=smem, size = 0x4, offset = 0x4, fixed_abs, tag = 'smem constant byte address 0x4 - core index']
  #allocation1 [shape = 'u32[144,128]{1,0:T(1,128)}', space=vmem, size = 0x12000, scoped, tag = 'internal scratch']
  %s0 = inlined_call_operand.hbm [shape: f32[8,128], index: 0, kind: input, shape index: {}]
  %s1 = inlined_call_operand.hbm [shape: f32[8,128], index: 1, kind: output, shape index: {}]
  %s2 = sld [smem:[#allocation0]]
  $region18: #{tpu_custom_call.1} parent=0
    _
  %s4 = ssub.s32 1, %s2
  %s5 = scalar_select 0, %s4, %s2
  $region1: #{tpu_custom_call.1} parent=0
    #allocation2 [shape = 'u8[4096]{0}', space=vmem, size = 0x1000, scoped, tag = 'input window, operand 0, single buffered']
    #allocation3 [shape = 's32[1]{0}', space=sflag, size = 0x4, scoped, tag = 'scoped memory for tpu_custom_call.1']
    #allocation4 [shape = 's32[1]{0}', space=sflag, size = 0x4, scoped, tag = 'scoped memory for tpu_custom_call.1']
    #allocation5 [shape = 'u8[4096]{0}', space=vmem, size = 0x1000, scoped, tag = 'output window, operand 0, single buffered']
    %6 = vsyncpa [#allocation3], 0
    %7 = vsyncpa [#allocation4], 0
    // Predicated region
    $region2: #{tpu_custom_call.1} parent=1 // pred_check
      _
    $region3: #{tpu_custom_call.1} parent=1 // pred_check_branch
      %9 = sbr.rel (0) target = $region5
    $region4: #{tpu_custom_call.1} parent=1 // pred_region
      %s11 = ssub.s32 128, 128
      %12 = vsyncadd [#allocation3], %s11
      %s14 = sshll.u32 [#allocation2], 4
      %s15 = int_to_ptr.vmem [resolvable:$true] %s14
      %17 = dma.hbm_to_vmem [thread:$0]  %s0, 128, %s15, [#allocation3]
    $region5: #{tpu_custom_call.1} parent=1 // pred_fallthru
      _
    // Predicated region
    $region6: #{tpu_custom_call.1} parent=1 // pred_check
      _
    $region7: #{tpu_custom_call.1} parent=1 // pred_check_branch
      %19 = sbr.rel (0) target = $region9
    $region8: #{tpu_custom_call.1} parent=1 // pred_region
      %20 = dma.done [#allocation3], 128
    $region9: #{tpu_custom_call.1} parent=1 // pred_fallthru
      _
    %v21 = vld [vmem:[#allocation2] sm:$0xff]
    %22 = vrot.lane.b32.xlu0 %v21, 1
    %v23 = vpop.permute.xlu0 %22
    %24 = vst [vmem:[#allocation5] sm:$0xff] %v23
    // Predicated region
    $region10: #{tpu_custom_call.1} parent=1 // pred_check
      _
    $region11: #{tpu_custom_call.1} parent=1 // pred_check_branch
      %26 = sbr.rel (0) target = $region13
    $region12: #{tpu_custom_call.1} parent=1 // pred_region
      %s28 = ssub.s32 128, 128
      %29 = vsyncadd [#allocation4], %s28
      %s31 = sshll.u32 [#allocation5], 4
      %s32 = int_to_ptr.vmem [resolvable:$true] %s31
      %34 = dma.vmem_to_hbm [thread:$0]  %s32, 128, %s1, [#allocation4]
    $region13: #{tpu_custom_call.1} parent=1 // pred_fallthru
      _
    // Predicated region
    $region14: #{tpu_custom_call.1} parent=1 // pred_check
      _
    $region15: #{tpu_custom_call.1} parent=1 // pred_check_branch
      %36 = sbr.rel (0) target = $region17
    $region16: #{tpu_custom_call.1} parent=1 // pred_region
      %37 = dma.done [#allocation4], 128
    $region17: #{tpu_custom_call.1} parent=1 // pred_fallthru
      _
    %38 = vsyncpa [#allocation3], 1
    %39 = vsyncpa [#allocation4], 1

</llo_original>
